<compile_context>
chip_gen: v5e
topology: v5e:2x2
jax: 0.10.0
libtpu: 0.0.40
codegen_flags: <defaults>
</compile_context>

<pallas_src>
import math

import jax
import jax.numpy as jnp
from jax.experimental import pallas as pl
from jax.experimental.pallas import tpu as pltpu

EPS = 1e-5


def _cdiv(a, b):
    return -(-a // b)


# ---------------------------------------------------------------------------
# Pallas kernel: the whole TCN_GCN_unit on one (TILE_R, V*C) row slab.
# ---------------------------------------------------------------------------
def fused_block_kernel(x_ref, w_all_ref, w_tl_ref, c_ref, o_ref):
    # x_ref     : (TILE_R, V*C_in)      bf16 channel-last rows of x0
    # w_all_ref : (V*C_in, 3*V*C_out)   bf16 [gcn(shift+gate+Linear+shift+BN) |
    #                                         down 1x1conv+BN | res 1x1conv+BN]
    # w_tl_ref  : (V*C_out, V*C_out)    bf16 tcn pre-BN folded into kron(I_V, W)
    # c_ref     : (8, V*C_out)  f32  row0: gcn+down bias, row1: res bias,
    #                                row2: tl bias, row3/4: tcn bn2 scale/offset
    # o_ref     : (TILE_R, V*C_out)  f32
    vc = o_ref.shape[-1]
    x = x_ref[...]

    # one MXU pass for all three branches (gcn / down / residual)
    yd = jnp.dot(x, w_all_ref[...], preferred_element_type=jnp.float32)

    # Shift_gcn tail: folded BN + down branch + relu         (f32 elementwise)
    g = jnp.maximum(yd[:, :vc] + yd[:, vc:2 * vc] + c_ref[0:1, :], 0.0)

    # Shift_tcn: (pre-BN folded into w_tl) -> 1x1 conv -> relu -> BN2
    t = jnp.dot(g.astype(w_tl_ref.dtype), w_tl_ref[...],
                preferred_element_type=jnp.float32) + c_ref[2:3, :]
    t = jnp.maximum(t, 0.0)
    t = t * c_ref[3:4, :] + c_ref[4:5, :]

    # residual tcn (1x1 conv + BN) and final relu
    r = yd[:, 2 * vc:] + c_ref[1:2, :]
    o_ref[...] = jnp.maximum(t + r, 0.0)


# ---------------------------------------------------------------------------
# Parameter initialization (deterministic, mirrors the module's __init__)
# ---------------------------------------------------------------------------
def _bn_fold(c):
    # eval-mode BN with gamma=1, beta=0, running_mean=0, running_var=1
    gamma = jnp.ones((c,), jnp.float32)
    beta = jnp.zeros((c,), jnp.float32)
    mean = jnp.zeros((c,), jnp.float32)
    var = jnp.ones((c,), jnp.float32)
    scale = gamma / jnp.sqrt(var + EPS)
    return scale, beta - mean * scale


def init_params(key, num_point, c_in, c_out):
    k_lin, k_down, k_tl_w, k_tl_b, k_res = jax.random.split(key, 5)
    p = {}

    # --- Shift_gcn ---
    p["lin_w"] = (jax.random.normal(k_lin, (c_in, c_out), jnp.float32)
                  * math.sqrt(1.0 / c_out))                        # Linear_weight
    p["lin_b"] = jnp.zeros((c_out,), jnp.float32)                  # Linear_bias
    p["feature_mask"] = jnp.zeros((num_point, c_in), jnp.float32)  # init const 0
    p["gcn_bn_s"], p["gcn_bn_o"] = _bn_fold(num_point * c_out)     # BN1d(V*C_out)
    # down = Conv2d(c_in, c_out, 1) (kaiming fan_out, bias 0) + BatchNorm2d
    p["down_w"] = (jax.random.normal(k_down, (c_in, c_out), jnp.float32)
                   * math.sqrt(2.0 / c_out))
    p["down_b"] = jnp.zeros((c_out,), jnp.float32)
    p["down_bn_s"], p["down_bn_o"] = _bn_fold(c_out)

    # --- Shift_tcn ---
    p["tcn_bn_s"], p["tcn_bn_o"] = _bn_fold(c_out)
    p["tl_w"] = (jax.random.normal(k_tl_w, (c_out, c_out), jnp.float32)
                 * math.sqrt(2.0 / c_out))                         # kaiming fan_out
    bound = 1.0 / math.sqrt(c_out)                                 # default conv bias
    p["tl_b"] = jax.random.uniform(k_tl_b, (c_out,), jnp.float32,
                                   minval=-bound, maxval=bound)
    p["tcn_bn2_s"], p["tcn_bn2_o"] = _bn_fold(c_out)

    # --- residual tcn(c_in, c_out, kernel_size=1, stride=1) ---
    p["res_w"] = (jax.random.normal(k_res, (c_in, c_out), jnp.float32)
                  * math.sqrt(2.0 / c_out))
    p["res_b"] = jnp.zeros((c_out,), jnp.float32)
    p["res_bn_s"], p["res_bn_o"] = _bn_fold(c_out)
    return p


# ---------------------------------------------------------------------------
# Constant folding: shifts, gating, biases, BNs -> 2 bf16 weights + f32 consts
# ---------------------------------------------------------------------------
def _shift_indices(V, c_in, c_out):
    # Shift_gcn.__init__: (i*C + j + j*C) % (C*V) = ((i+j)%V)*C + j   etc.
    i = jnp.arange(V)
    j_in = jnp.arange(c_in)
    j_out = jnp.arange(c_out)
    shift_in = (((i[:, None] + j_in[None, :]) % V) * c_in + j_in[None, :]).reshape(-1)
    shift_out = (((i[:, None] - j_out[None, :]) % V) * c_out + j_out[None, :]).reshape(-1)
    return shift_in, shift_out


def fold_params(p, V, c_in, c_out):
    shift_in, shift_out = _shift_indices(V, c_in, c_out)
    eye = jnp.eye(V, dtype=jnp.float32)

    # --- Shift_gcn: shift_in + gate + Linear + shift_out + BN1d -> one matrix
    gate = jnp.tanh(p["feature_mask"]) + 1.0                       # (V, C_in)
    wg = gate[:, :, None] * p["lin_w"][None, :, :]                 # (V, C_in, C_out)
    bd = (wg[:, :, None, :] * eye[:, None, :, None]).reshape(V * c_in, V * c_out)
    w_gcn = bd[jnp.argsort(shift_in)][:, shift_out]                # fold both permutes
    b_gcn = jnp.tile(p["lin_b"], V)[shift_out]
    w_gcn = w_gcn * p["gcn_bn_s"][None, :]
    b_gcn = b_gcn * p["gcn_bn_s"] + p["gcn_bn_o"]

    # --- down / residual 1x1 conv + BN
    wd = p["down_w"] * p["down_bn_s"][None, :]
    bd_ = p["down_b"] * p["down_bn_s"] + p["down_bn_o"]
    wr = p["res_w"] * p["res_bn_s"][None, :]
    br = p["res_b"] * p["res_bn_s"] + p["res_bn_o"]
    b_down = jnp.tile(bd_, V)
    b_res = jnp.tile(br, V)

    # one merged weight: [gcn | down | residual]  -> single MXU pass per tile
    w_all = jnp.concatenate([w_gcn, jnp.kron(eye, wd), jnp.kron(eye, wr)], axis=1)

    # --- Shift_tcn: fold pre-BN into temporal_linear, keep post-relu BN2
    tbn_s = jnp.tile(p["tcn_bn_s"], V)
    tbn_o = jnp.tile(p["tcn_bn_o"], V)
    w_tl = jnp.kron(eye, p["tl_w"])                                # (V*C_out, V*C_out)
    b_tl = jnp.tile(p["tl_b"], V) + tbn_o @ w_tl
    w_tl = tbn_s[:, None] * w_tl
    tbn2_s = jnp.tile(p["tcn_bn2_s"], V)
    tbn2_o = jnp.tile(p["tcn_bn2_o"], V)

    consts = jnp.zeros((8, V * c_out), jnp.float32)
    consts = consts.at[0].set(b_gcn + b_down)
    consts = consts.at[1].set(b_res)
    consts = consts.at[2].set(b_tl)
    consts = consts.at[3].set(tbn2_s)
    consts = consts.at[4].set(tbn2_o)

    # MXU operands in bf16 (all folding done in f32 above); consts stay f32
    return w_all.astype(jnp.bfloat16), w_tl.astype(jnp.bfloat16), consts


# ---------------------------------------------------------------------------
# Forward wrapper
# ---------------------------------------------------------------------------
def tcn_gcn_unit(x0, params, num_point, c_in, c_out,
                 tile_rows=2048, channels_last=False):
    n, c, t, v = x0.shape
    assert c == c_in and v == num_point
    rows = n * t

    # channel-last slab: one row per (n, t), V*C_in lanes wide; transpose +
    # bf16 convert fuse into a single XLA pass (halves the kernel's x read).
    x_cl = (jnp.transpose(x0, (0, 2, 3, 1))
            .reshape(rows, v * c_in)
            .astype(jnp.bfloat16))

    w_all, w_tl, consts = fold_params(params, v, c_in, c_out)

    # --- row tiling ---------------------------------------------------------
    # * multiple of 8, capped at `tile_rows` (~5-6 KB VMEM per row incl. the
    #   double-buffered x/out tiles and the f32 intermediates)
    # * at least 2 grid steps when rows allow, so both v7x TensorCores run
    # * tile count chosen first, then rows split evenly -> minimal padding
    rows8 = 8 * _cdiv(rows, 8)
    num_tiles = max(_cdiv(rows8, tile_rows), 2 if rows8 >= 16 else 1)
    tile_r = 8 * _cdiv(rows8, 8 * num_tiles)
    rows_pad = tile_r * num_tiles
    if rows_pad != rows:
        # padded rows pick up bias+ReLU garbage; they are sliced off below
        x_cl = jnp.pad(x_cl, ((0, rows_pad - rows), (0, 0)))

    out = pl.pallas_call(
        fused_block_kernel,
        out_shape=jax.ShapeDtypeStruct((rows_pad, v * c_out), jnp.float32),
        grid=(num_tiles,),
        in_specs=[
            pl.BlockSpec((tile_r, v * c_in), lambda i: (i, 0)),           # x rows
            pl.BlockSpec((v * c_in, 3 * v * c_out), lambda i: (0, 0)),    # w_all
            pl.BlockSpec((v * c_out, v * c_out), lambda i: (0, 0)),       # w_tl
            pl.BlockSpec((8, v * c_out), lambda i: (0, 0)),               # consts
        ],
        out_specs=pl.BlockSpec((tile_r, v * c_out), lambda i: (i, 0)),
        compiler_params=pltpu.CompilerParams(
            dimension_semantics=("parallel",),
            vmem_limit_bytes=32 * 1024 * 1024),
    )(x_cl, w_all, w_tl, consts)

    out = out[:rows].reshape(n, t, v, c_out)
    if channels_last:
        return out                      # NTVC: skips the extra HBM pass below
    # TODO(synk): this transpose back to PyTorch NCHW is a full extra HBM pass
    #             over the output; drop it (channels_last=True) if the
    #             downstream consumer accepts NTVC.
    return jnp.transpose(out, (0, 3, 1, 2))


# ---------------------------------------------------------------------------
# Pure-JAX reference (unfused, f32, mirrors the PyTorch forward) for validation
# ---------------------------------------------------------------------------
def reference_forward(x0, p, num_point, c_in, c_out):
    n, c, t, v = x0.shape
    shift_in, shift_out = _shift_indices(v, c_in, c_out)
    x = jnp.transpose(x0, (0, 2, 3, 1)).reshape(n * t, v * c_in)
    x = x[:, shift_in].reshape(n * t, v, c_in)
    x = x * (jnp.tanh(p["feature_mask"]) + 1.0)
    x = jnp.einsum("nwc,cd->nwd", x, p["lin_w"]) + p["lin_b"]
    x = x.reshape(n * t, v * c_out)[:, shift_out]
    x = x * p["gcn_bn_s"] + p["gcn_bn_o"]
    x = x.reshape(n * t, v, c_out)
    x0r = jnp.transpose(x0, (0, 2, 3, 1)).reshape(n * t, v, c_in)
    down = (x0r @ p["down_w"] + p["down_b"]) * p["down_bn_s"] + p["down_bn_o"]
    g = jnp.maximum(x + down, 0.0)
    tt = g * p["tcn_bn_s"] + p["tcn_bn_o"]
    tt = jnp.maximum(tt @ p["tl_w"] + p["tl_b"], 0.0)
    tt = tt * p["tcn_bn2_s"] + p["tcn_bn2_o"]
    r = (x0r @ p["res_w"] + p["res_b"]) * p["res_bn_s"] + p["res_bn_o"]
    out = jnp.maximum(tt + r, 0.0)
    return jnp.transpose(out.reshape(n, t, v, c_out), (0, 3, 1, 2))


# ---------------------------------------------------------------------------
if __name__ == "__main__":
    N, C_IN, T, V = 2, 4, 16, 16     # batch, in_channels, time, num_point
    C_OUT = 8                        # out_channels (!= C_IN -> down/residual convs)

    key = jax.random.PRNGKey(0)
    k_x, k_p = jax.random.split(key)
    x = jax.random.normal(k_x, (N, C_IN, T, V), jnp.float32)
    params = init_params(k_p, V, C_IN, C_OUT)

    out = tcn_gcn_unit(x, params, V, C_IN, C_OUT)
    out = jax.block_until_ready(out)

    ref = jax.block_until_ready(reference_forward(x, params, V, C_IN, C_OUT))

    assert out.shape == (N, C_OUT, T, V), out.shape
    assert bool(jnp.all(jnp.isfinite(out)))
    assert bool(jnp.all(out >= 0.0))                      # final ReLU
    # bf16 MXU operands -> loosened tolerance vs. the f32 reference
    assert bool(jnp.allclose(out, ref, atol=5e-2, rtol=5e-2)), (
        float(jnp.max(jnp.abs(out - ref))))
    print("KERNEL_OK")
</pallas_src>

<mosaic_0001>
module attributes {stable_mosaic.version = 11 : i64} {
  func.func @fused_block_kernel(%arg0: i32, %arg1: memref<16x64xbf16, #tpu.memory_space<vmem>>, %arg2: memref<64x384xbf16, #tpu.memory_space<vmem>>, %arg3: memref<128x128xbf16, #tpu.memory_space<vmem>>, %arg4: memref<8x128xf32, #tpu.memory_space<vmem>>, %arg5: memref<16x128xf32, #tpu.memory_space<vmem>>) attributes {dimension_semantics = [#tpu.dimension_semantics<parallel>], iteration_bounds = array<i64: 2>, scalar_prefetch = 0 : i64, scratch_operands = 0 : i64, tpu.core_type = #tpu.core_type<tc>, window_params = [{transform_indices = @transform_0, window_bounds = array<i64: 16, 64>}, {pipeline_mode = #tpu.pipeline_mode<synchronous>, transform_indices = @transform_1, window_bounds = array<i64: 64, 384>}, {pipeline_mode = #tpu.pipeline_mode<synchronous>, transform_indices = @transform_2, window_bounds = array<i64: 128, 128>}, {pipeline_mode = #tpu.pipeline_mode<synchronous>, transform_indices = @transform_3, window_bounds = array<i64: 8, 128>}, {transform_indices = @transform_4, window_bounds = array<i64: 16, 128>}]} {
    %c0 = arith.constant 0 : index
    %c0_0 = arith.constant 0 : index
    %0 = vector.load %arg1[%c0, %c0_0] : memref<16x64xbf16, #tpu.memory_space<vmem>>, vector<16x64xbf16>
    %c0_1 = arith.constant 0 : index
    %c0_2 = arith.constant 0 : index
    %1 = vector.load %arg2[%c0_1, %c0_2] : memref<64x384xbf16, #tpu.memory_space<vmem>>, vector<64x384xbf16>
    %cst = arith.constant dense<0.000000e+00> : vector<16x384xf32>
    %2 = tpu.matmul %0, %1, %cst {dimension_numbers = #tpu.dot_dimension_numbers<[1], [0], [0], [1], [0, 0, 1, 1], [], []>} : vector<16x64xbf16>, vector<64x384xbf16>, vector<16x384xf32> -> vector<16x384xf32>
    %3 = vector.extract_strided_slice %2 {offsets = [0, 0], sizes = [16, 128], strides = [1, 1]} : vector<16x384xf32> to vector<16x128xf32>
    %4 = vector.extract_strided_slice %2 {offsets = [0, 128], sizes = [16, 128], strides = [1, 1]} : vector<16x384xf32> to vector<16x128xf32>
    %5 = arith.addf %3, %4 : vector<16x128xf32>
    %c0_3 = arith.constant 0 : index
    %c0_4 = arith.constant 0 : index
    %6 = vector.load %arg4[%c0_3, %c0_4] : memref<8x128xf32, #tpu.memory_space<vmem>>, vector<1x128xf32>
    %7 = vector.broadcast %6 : vector<1x128xf32> to vector<16x128xf32>
    %8 = arith.addf %5, %7 : vector<16x128xf32>
    %cst_5 = arith.constant 0.000000e+00 : f32
    %9 = vector.broadcast %cst_5 : f32 to vector<16x128xf32>
    %10 = arith.maximumf %8, %9 : vector<16x128xf32>
    %11 = arith.truncf %10 : vector<16x128xf32> to vector<16x128xbf16>
    %c0_6 = arith.constant 0 : index
    %c0_7 = arith.constant 0 : index
    %12 = vector.load %arg3[%c0_6, %c0_7] : memref<128x128xbf16, #tpu.memory_space<vmem>>, vector<128x128xbf16>
    %cst_8 = arith.constant dense<0.000000e+00> : vector<16x128xf32>
    %13 = tpu.matmul %11, %12, %cst_8 {dimension_numbers = #tpu.dot_dimension_numbers<[1], [0], [0], [1], [0, 0, 1, 1], [], []>} : vector<16x128xbf16>, vector<128x128xbf16>, vector<16x128xf32> -> vector<16x128xf32>
    %c2 = arith.constant 2 : index
    %c0_9 = arith.constant 0 : index
    %14 = vector.load %arg4[%c2, %c0_9] : memref<8x128xf32, #tpu.memory_space<vmem>>, vector<1x128xf32>
    %15 = vector.broadcast %14 : vector<1x128xf32> to vector<16x128xf32>
    %16 = arith.addf %13, %15 : vector<16x128xf32>
    %cst_10 = arith.constant 0.000000e+00 : f32
    %17 = vector.broadcast %cst_10 : f32 to vector<16x128xf32>
    %18 = arith.maximumf %16, %17 : vector<16x128xf32>
    %c3 = arith.constant 3 : index
    %c0_11 = arith.constant 0 : index
    %19 = vector.load %arg4[%c3, %c0_11] : memref<8x128xf32, #tpu.memory_space<vmem>>, vector<1x128xf32>
    %20 = vector.broadcast %19 : vector<1x128xf32> to vector<16x128xf32>
    %21 = arith.mulf %18, %20 : vector<16x128xf32>
    %c4 = arith.constant 4 : index
    %c0_12 = arith.constant 0 : index
    %22 = vector.load %arg4[%c4, %c0_12] : memref<8x128xf32, #tpu.memory_space<vmem>>, vector<1x128xf32>
    %23 = vector.broadcast %22 : vector<1x128xf32> to vector<16x128xf32>
    %24 = arith.addf %21, %23 : vector<16x128xf32>
    %25 = vector.extract_strided_slice %2 {offsets = [0, 256], sizes = [16, 128], strides = [1, 1]} : vector<16x384xf32> to vector<16x128xf32>
    %c1 = arith.constant 1 : index
    %c0_13 = arith.constant 0 : index
    %26 = vector.load %arg4[%c1, %c0_13] : memref<8x128xf32, #tpu.memory_space<vmem>>, vector<1x128xf32>
    %27 = vector.broadcast %26 : vector<1x128xf32> to vector<16x128xf32>
    %28 = arith.addf %25, %27 : vector<16x128xf32>
    %29 = arith.addf %24, %28 : vector<16x128xf32>
    %cst_14 = arith.constant 0.000000e+00 : f32
    %30 = vector.broadcast %cst_14 : f32 to vector<16x128xf32>
    %31 = arith.maximumf %29, %30 : vector<16x128xf32>
    %c0_15 = arith.constant 0 : index
    %c0_16 = arith.constant 0 : index
    %32 = vector.load %arg5[%c0_15, %c0_16] : memref<16x128xf32, #tpu.memory_space<vmem>>, vector<16x128xf32>
    tpu.vector_store %arg5[%c0_15, %c0_16], %31 {strides = array<i32>} : memref<16x128xf32, #tpu.memory_space<vmem>>, vector<16x128xf32>,
    return
  }
  func.func @transform_0(%arg0: i32) -> (i32, i32) {
    %c0_i32 = arith.constant 0 : i32
    %c0_i32_0 = arith.constant 0 : i32
    return %arg0, %c0_i32 : i32, i32
  }
  func.func @transform_1(%arg0: i32) -> (i32, i32) {
    %c0_i32 = arith.constant 0 : i32
    %c0_i32_0 = arith.constant 0 : i32
    %c0_i32_1 = arith.constant 0 : i32
    return %c0_i32, %c0_i32_0 : i32, i32
  }
  func.func @transform_2(%arg0: i32) -> (i32, i32) {
    %c0_i32 = arith.constant 0 : i32
    %c0_i32_0 = arith.constant 0 : i32
    %c0_i32_1 = arith.constant 0 : i32
    return %c0_i32, %c0_i32_0 : i32, i32
  }
  func.func @transform_3(%arg0: i32) -> (i32, i32) {
    %c0_i32 = arith.constant 0 : i32
    %c0_i32_0 = arith.constant 0 : i32
    %c0_i32_1 = arith.constant 0 : i32
    return %c0_i32, %c0_i32_0 : i32, i32
  }
  func.func @transform_4(%arg0: i32) -> (i32, i32) {
    %c0_i32 = arith.constant 0 : i32
    %c0_i32_0 = arith.constant 0 : i32
    return %arg0, %c0_i32 : i32, i32
  }
}

</mosaic_0001>

<llo_original>
// kernel: tpu_custom_call.1
$region0: #{tpu_custom_call.1}
  #allocation0 [shape = 'u32[]', space=smem, size = 0x4, offset = 0x4, fixed_abs, tag = 'smem constant byte address 0x4 - core index']
  #allocation1 [shape = 'u32[72,128]{1,0:T(1,128)}', space=vmem, size = 0x9000, scoped, tag = 'internal scratch']
  %s0 = inlined_call_operand.hbm [shape: bf16[32,64], index: 0, kind: input, shape index: {}]
  %s1 = inlined_call_operand.hbm [shape: bf16[64,384], index: 1, kind: input, shape index: {}]
  %s2 = inlined_call_operand.hbm [shape: bf16[128,128], index: 2, kind: input, shape index: {}]
  %s3 = inlined_call_operand.hbm [shape: f32[8,128], index: 3, kind: input, shape index: {}]
  %s4 = inlined_call_operand.hbm [shape: f32[32,128], index: 4, kind: output, shape index: {}]
  %s5 = sld [smem:[#allocation0]]
  $region65: #{tpu_custom_call.1} parent=0
    _
  %s7 = ssub.s32 1, %s5
  %s8 = scalar_select 0, %s7, %s5
  $region1: #{tpu_custom_call.1} parent=0
    #allocation2 [shape = 'u8[8192]{0}', space=vmem, size = 0x2000, scoped, tag = 'input window, operand 0']
    #allocation3 [shape = 's32[2]{0}', space=sflag, size = 0x8, scoped, tag = 'scoped memory for tpu_custom_call.1']
    #allocation4 [shape = 's32[2]{0}', space=sflag, size = 0x8, scoped, tag = 'scoped memory for tpu_custom_call.1']
    #allocation5 [shape = 'u8[49152]{0}', space=vmem, size = 0xc000, scoped, tag = 'input window, operand 1, single buffered']
    #allocation6 [shape = 's32[1]{0}', space=sflag, size = 0x4, scoped, tag = 'scoped memory for tpu_custom_call.1']
    #allocation7 [shape = 'u8[32768]{0}', space=vmem, size = 0x8000, scoped, tag = 'input window, operand 2, single buffered']
    #allocation8 [shape = 'u8[4096]{0}', space=vmem, size = 0x1000, scoped, tag = 'input window, operand 3, single buffered']
    #allocation9 [shape = 's32[1]{0}', space=sflag, size = 0x4, scoped, tag = 'scoped memory for tpu_custom_call.1']
    #allocation10 [shape = 'u8[16384]{0}', space=vmem, size = 0x4000, scoped, tag = 'output window, operand 0']
    %9 = vsyncpa [#allocation3], 0
    %s10 = scalar_lea.sflag [#allocation3], 1
    %11 = vsyncpa %s10, 0
    %12 = vsyncpa [#allocation6], 0
    %13 = vsyncpa [#allocation9], 0
    %14 = vsyncpa [#allocation4], 0
    %s15 = scalar_lea.sflag [#allocation4], 1
    %16 = vsyncpa %s15, 0
    loop: start=0, step=1, limit=4
    $region2: #{tpu_custom_call.1} parent=1 // loop_pre_header
      _
    $region3: #{tpu_custom_call.1} parent=1 // loop_header
      %s18 = sphi 0, %s22
      %p19 = scmp.ge.s32.totalorder %s18, 4
      %s28 = sphi 0, %s30
      %s31 = sphi 0, %s28
      %s32 = sphi 0, %s31
      %s48 = sphi 0, %s32
      %s52 = sphi 0, %s52
      %s54 = sphi 0, %s52
      %s55 = sphi 0, %s54
      %s69 = sphi 0, %s55
      %s73 = sphi 0, %s73
      %s75 = sphi 0, %s73
      %s76 = sphi 0, %s75
      %s90 = sphi 0, %s76
      %s94 = sphi 0, %s94
      %s96 = sphi 0, %s94
      %s97 = sphi 0, %s96
      %s111 = sphi 0, %s97
      %s117 = sphi 0, %s119
      %s120 = sphi 0, %s117
      %s121 = sphi 0, %s120
      %s137 = sphi 0, %s121
    $region4: #{tpu_custom_call.1} parent=1 // loop_header_branch
      %21 = sbr.rel (%p19) target = $region8
    $region5: #{tpu_custom_call.1} parent=1 // loop_body
      %s23 = ssub.s32 %s18, 1
      %s24 = ssub.s32 %s18, 2
      %s25 = sadd.s32 %s18, 1
      %s26 = ssub.s32 %s18, %s25
      %p27 = scmp.eq.s32.totalorder %s26, 0
      %s29 = sadd.s32 %s28, 1
      %s30 = scalar_select %p27, %s28, %s29
      %p33 = pneg %p27
      %p34 = scmp.eq.s32.totalorder %s18, 1
      %p35 = por %p33, %p34
      %p36 = scmp.ne.s32.totalorder %s28, %s31
      %p37 = scmp.eq.s32.totalorder %s18, 0
      %p38 = por %p36, %p37
      %p39 = scmp.ne.s32.totalorder %s28, %s31
      %p40 = scmp.eq.s32.totalorder %s23, 1
      %p41 = por %p39, %p40
      %p42 = scmp.ne.s32.totalorder %s31, %s32
      %p43 = scmp.eq.s32.totalorder %s23, 0
      %p44 = por %p42, %p43
      %p45 = scmp.ne.s32.totalorder %s31, %s32
      %p46 = scmp.eq.s32.totalorder %s24, 1
      %p47 = por %p45, %p46
      %p49 = scmp.ne.s32.totalorder %s32, %s48
      %p50 = scmp.eq.s32.totalorder %s24, 0
      %p51 = por %p49, %p50
      %s53 = sadd.s32 %s52, 1
      %p56 = scmp.eq.s32.totalorder %s18, 1
      %p57 = scmp.ne.s32.totalorder %s52, %s54
      %p58 = scmp.eq.s32.totalorder %s18, 0
      %p59 = por %p57, %p58
      %p60 = scmp.ne.s32.totalorder %s52, %s54
      %p61 = scmp.eq.s32.totalorder %s23, 1
      %p62 = por %p60, %p61
      %p63 = scmp.ne.s32.totalorder %s54, %s55
      %p64 = scmp.eq.s32.totalorder %s23, 0
      %p65 = por %p63, %p64
      %p66 = scmp.ne.s32.totalorder %s54, %s55
      %p67 = scmp.eq.s32.totalorder %s24, 1
      %p68 = por %p66, %p67
      %p70 = scmp.ne.s32.totalorder %s55, %s69
      %p71 = scmp.eq.s32.totalorder %s24, 0
      %p72 = por %p70, %p71
      %s74 = sadd.s32 %s73, 1
      %p77 = scmp.eq.s32.totalorder %s18, 1
      %p78 = scmp.ne.s32.totalorder %s73, %s75
      %p79 = scmp.eq.s32.totalorder %s18, 0
      %p80 = por %p78, %p79
      %p81 = scmp.ne.s32.totalorder %s73, %s75
      %p82 = scmp.eq.s32.totalorder %s23, 1
      %p83 = por %p81, %p82
      %p84 = scmp.ne.s32.totalorder %s75, %s76
      %p85 = scmp.eq.s32.totalorder %s23, 0
      %p86 = por %p84, %p85
      %p87 = scmp.ne.s32.totalorder %s75, %s76
      %p88 = scmp.eq.s32.totalorder %s24, 1
      %p89 = por %p87, %p88
      %p91 = scmp.ne.s32.totalorder %s76, %s90
      %p92 = scmp.eq.s32.totalorder %s24, 0
      %p93 = por %p91, %p92
      %s95 = sadd.s32 %s94, 1
      %p98 = scmp.eq.s32.totalorder %s18, 1
      %p99 = scmp.ne.s32.totalorder %s94, %s96
      %p100 = scmp.eq.s32.totalorder %s18, 0
      %p101 = por %p99, %p100
      %p102 = scmp.ne.s32.totalorder %s94, %s96
      %p103 = scmp.eq.s32.totalorder %s23, 1
      %p104 = por %p102, %p103
      %p105 = scmp.ne.s32.totalorder %s96, %s97
      %p106 = scmp.eq.s32.totalorder %s23, 0
      %p107 = por %p105, %p106
      %p108 = scmp.ne.s32.totalorder %s96, %s97
      %p109 = scmp.eq.s32.totalorder %s24, 1
      %p110 = por %p108, %p109
      %p112 = scmp.ne.s32.totalorder %s97, %s111
      %p113 = scmp.eq.s32.totalorder %s24, 0
      %p114 = por %p112, %p113
      %s115 = ssub.s32 %s18, %s25
      %p116 = scmp.eq.s32.totalorder %s115, 0
      %s118 = sadd.s32 %s117, 1
      %s119 = scalar_select %p116, %s117, %s118
      %p122 = pneg %p116
      %p123 = scmp.eq.s32.totalorder %s18, 1
      %p124 = por %p122, %p123
      %p125 = scmp.ne.s32.totalorder %s117, %s120
      %p126 = scmp.eq.s32.totalorder %s18, 0
      %p127 = por %p125, %p126
      %p128 = scmp.ne.s32.totalorder %s117, %s120
      %p129 = scmp.eq.s32.totalorder %s23, 1
      %p130 = por %p128, %p129
      %p131 = scmp.ne.s32.totalorder %s120, %s121
      %p132 = scmp.eq.s32.totalorder %s23, 0
      %p133 = por %p131, %p132
      %p134 = scmp.ne.s32.totalorder %s120, %s121
      %p135 = scmp.eq.s32.totalorder %s24, 1
      %p136 = por %p134, %p135
      %p138 = scmp.ne.s32.totalorder %s121, %s137
      %p139 = scmp.eq.s32.totalorder %s24, 0
      %p140 = por %p138, %p139
      %p141 = scmp.le.s32.totalorder 1, %s18
      %p142 = scmp.lt.s32.totalorder %s18, 3
      %p143 = pnand %p141, %p142
      %p144 = pneg %p143
      // Predicated region
      $region9: #{tpu_custom_call.1} parent=5 // pred_check
        _
      $region10: #{tpu_custom_call.1} parent=5 // pred_check_branch
        %146 = sbr.rel (%p143) target = $region12
      $region11: #{tpu_custom_call.1} parent=5 // pred_region
        %s147 = ssub.s32 %s18, 1
        // Predicated region
        $region13: #{tpu_custom_call.1} parent=11 // pred_check
          %p148 = pneg %p65
        $region14: #{tpu_custom_call.1} parent=11 // pred_check_branch
          %150 = sbr.rel (%p148) target = $region16
        $region15: #{tpu_custom_call.1} parent=11 // pred_region
          %152 = vsyncadd [#allocation6], 0
          %s153 = sshll.u32 %s1, 4
          %s154 = int_to_ptr.hbm [resolvable:$true] %s153
          %s155 = sshll.u32 [#allocation5], 4
          %s156 = int_to_ptr.vmem [resolvable:$true] %s155
          %161 = dma.hbm_to_vmem [thread:$0]  %s154, 1536, %s156, [#allocation6], 192, 192, 12
        $region16: #{tpu_custom_call.1} parent=11 // pred_fallthru
          _
        // Predicated region
        $region17: #{tpu_custom_call.1} parent=11 // pred_check
          %p162 = pneg %p86
        $region18: #{tpu_custom_call.1} parent=11 // pred_check_branch
          %164 = sbr.rel (%p162) target = $region20
        $region19: #{tpu_custom_call.1} parent=11 // pred_region
          %166 = vsyncadd [#allocation6], 0
          %s167 = sshll.u32 %s2, 4
          %s168 = int_to_ptr.hbm [resolvable:$true] %s167
          %s169 = sshll.u32 [#allocation7], 4
          %s170 = int_to_ptr.vmem [resolvable:$true] %s169
          %175 = dma.hbm_to_vmem [thread:$0]  %s168, 1024, %s170, [#allocation6], 64, 64, 4
        $region20: #{tpu_custom_call.1} parent=11 // pred_fallthru
          _
        // Predicated region
        $region21: #{tpu_custom_call.1} parent=11 // pred_check
          %p176 = pneg %p107
        $region22: #{tpu_custom_call.1} parent=11 // pred_check_branch
          %178 = sbr.rel (%p176) target = $region24
        $region23: #{tpu_custom_call.1} parent=11 // pred_region
          %180 = vsyncadd [#allocation9], 0
          %s182 = sshll.u32 %s3, 4
          %s183 = int_to_ptr.hbm [resolvable:$true] %s182
          %s184 = sshll.u32 [#allocation8], 4
          %s185 = int_to_ptr.vmem [resolvable:$true] %s184
          %187 = dma.hbm_to_vmem [thread:$0]  %s183, 128, %s185, [#allocation9]
        $region24: #{tpu_custom_call.1} parent=11 // pred_fallthru
          _
      $region12: #{tpu_custom_call.1} parent=5 // pred_fallthru
        _
      %p188 = scmp.lt.s32.totalorder %s18, 2
      // Predicated region
      $region25: #{tpu_custom_call.1} parent=5 // pred_check
        %p189 = pneg %p188
      $region26: #{tpu_custom_call.1} parent=5 // pred_check_branch
        %191 = sbr.rel (%p189) target = $region28
      $region27: #{tpu_custom_call.1} parent=5 // pred_region
        // Predicated region
        $region29: #{tpu_custom_call.1} parent=27 // pred_check
          %p192 = pneg %p38
        $region30: #{tpu_custom_call.1} parent=27 // pred_check_branch
          %194 = sbr.rel (%p192) target = $region32
        $region31: #{tpu_custom_call.1} parent=27 // pred_region
          %s195 = sand.u32 %s28, 1
          %s196 = scalar_lea.sflag [#allocation3], %s195
          %s197 = sand.u32 %s28, 1
          %s198 = smul.addr %s197, 8
          %s199 = scalar_lea.vmem [#allocation2], %s198
          %s200 = smul.u32 2, %s18
          %202 = vsyncadd %s196, 0
          %s203 = smul.addr %s200, 4
          %s204 = scalar_lea.hbm %s0, %s203
          %s205 = sshll.u32 %s204, 4
          %s206 = int_to_ptr.hbm [resolvable:$true] %s205
          %s207 = sshll.u32 %s199, 4
          %s208 = int_to_ptr.vmem [resolvable:$true] %s207
          %213 = dma.hbm_to_vmem [thread:$0]  %s206, 128, %s208, %s196, 64, 64, 4
        $region32: #{tpu_custom_call.1} parent=27 // pred_fallthru
          _
      $region28: #{tpu_custom_call.1} parent=5 // pred_fallthru
        _
      %p214 = scmp.le.s32.totalorder 1, %s18
      %p215 = scmp.lt.s32.totalorder %s18, 3
      %p216 = pnand %p214, %p215
      %p217 = pneg %p216
      // Predicated region
      $region33: #{tpu_custom_call.1} parent=5 // pred_check
        _
      $region34: #{tpu_custom_call.1} parent=5 // pred_check_branch
        %219 = sbr.rel (%p216) target = $region36
      $region35: #{tpu_custom_call.1} parent=5 // pred_region
        %s220 = ssub.s32 %s18, 1
        %s221 = sand.u32 %s31, 1
        %s222 = scalar_lea.sflag [#allocation3], %s221
        %s223 = sand.u32 %s31, 1
        %s224 = smul.addr %s223, 8
        %s225 = scalar_lea.vmem [#allocation2], %s224
        // Predicated region
        $region37: #{tpu_custom_call.1} parent=35 // pred_check
          %p226 = pneg %p44
        $region38: #{tpu_custom_call.1} parent=35 // pred_check_branch
          %228 = sbr.rel (%p226) target = $region40
        $region39: #{tpu_custom_call.1} parent=35 // pred_region
          %230 = dma.done %s222, 128
        $region40: #{tpu_custom_call.1} parent=35 // pred_fallthru
          _
        // Predicated region
        $region41: #{tpu_custom_call.1} parent=35 // pred_check
          %p231 = pneg %p65
        $region42: #{tpu_custom_call.1} parent=35 // pred_check_branch
          %233 = sbr.rel (%p231) target = $region44
        $region43: #{tpu_custom_call.1} parent=35 // pred_region
          %235 = dma.done [#allocation6], 1536
        $region44: #{tpu_custom_call.1} parent=35 // pred_fallthru
          _
        // Predicated region
        $region45: #{tpu_custom_call.1} parent=35 // pred_check
          %p236 = pneg %p86
        $region46: #{tpu_custom_call.1} parent=35 // pred_check_branch
          %238 = sbr.rel (%p236) target = $region48
        $region47: #{tpu_custom_call.1} parent=35 // pred_region
          %240 = dma.done [#allocation6], 1024
        $region48: #{tpu_custom_call.1} parent=35 // pred_fallthru
          _
        // Predicated region
        $region49: #{tpu_custom_call.1} parent=35 // pred_check
          %p241 = pneg %p107
        $region50: #{tpu_custom_call.1} parent=35 // pred_check_branch
          %243 = sbr.rel (%p241) target = $region52
        $region51: #{tpu_custom_call.1} parent=35 // pred_region
          %245 = dma.done [#allocation9], 128
        $region52: #{tpu_custom_call.1} parent=35 // pred_fallthru
          _
        %s246 = sand.u32 %s31, 1
        %s247 = scalar_lea.sflag [#allocation3], %s246
        %s248 = sand.u32 %s31, 1
        %s249 = smul.addr %s248, 8
        %s250 = scalar_lea.vmem [#allocation2], %s249
        %p251 = pneg %p44
        %p252 = pneg %p41
        %p253 = pneg %p65
        %p254 = pneg %p62
        %p255 = pneg %p86
        %p256 = pneg %p83
        %p257 = pneg %p107
        %p258 = pneg %p104
        %p259 = pneg %p133
        %p260 = pneg %p130
        %s261 = sand.u32 %s120, 1
        %s262 = scalar_lea.sflag [#allocation4], %s261
        %s263 = sand.u32 %s120, 1
        %s264 = smul.addr %s263, 16
        %s265 = scalar_lea.vmem [#allocation10], %s264
        %s266 = smul.u32 2, %s23
        %s267 = smul.u32 2, %s23
        %v269 = vld [vmem:[%s225] sm:$0xf]
        %v270 = vld [vmem:[%s225 + $0x4] sm:$0xf]
        %v271 = vld [vmem:[#allocation5] sm:$0xff]
        %v272 = vld [vmem:[#allocation5 + $0x8] sm:$0xf]
        %v273 = vld [vmem:[#allocation5 + $0xc] sm:$0xff]
        %v274 = vld [vmem:[#allocation5 + $0x14] sm:$0xf]
        %v275 = vld [vmem:[#allocation5 + $0x18] sm:$0xff]
        %v276 = vld [vmem:[#allocation5 + $0x20] sm:$0xf]
        %v277 = vld [vmem:[#allocation5 + $0x24] sm:$0xff]
        %v278 = vld [vmem:[#allocation5 + $0x2c] sm:$0xf]
        %v279 = vld [vmem:[#allocation5 + $0x30] sm:$0xff]
        %v280 = vld [vmem:[#allocation5 + $0x38] sm:$0xf]
        %v281 = vld [vmem:[#allocation5 + $0x3c] sm:$0xff]
        %v282 = vld [vmem:[#allocation5 + $0x44] sm:$0xf]
        %v283 = vld [vmem:[#allocation5 + $0x48] sm:$0xff]
        %v284 = vld [vmem:[#allocation5 + $0x50] sm:$0xf]
        %v285 = vld [vmem:[#allocation5 + $0x54] sm:$0xff]
        %v286 = vld [vmem:[#allocation5 + $0x5c] sm:$0xf]
        %v289 = vunpack.c.l.b16 %v269
        %v290 = vunpack.c.l.b16 %v270
        %v291 = vpack.c.b16 %v290, %v289
        %v308 = vunpack.c.l.b16 %v271
        %v309 = vunpack.c.h.b16 %v271
        %v310 = vunpack.c.l.b16 %v272
        %v311 = vunpack.c.l.b16 %v273
        %v312 = vunpack.c.h.b16 %v273
        %v313 = vunpack.c.l.b16 %v274
        %v314 = vunpack.c.l.b16 %v275
        %v315 = vunpack.c.h.b16 %v275
        %v316 = vunpack.c.l.b16 %v276
        %v317 = vunpack.c.l.b16 %v277
        %v318 = vunpack.c.h.b16 %v277
        %v319 = vunpack.c.l.b16 %v278
        %v320 = vunpack.c.l.b16 %v279
        %v321 = vunpack.c.h.b16 %v279
        %v322 = vunpack.c.l.b16 %v280
        %v323 = vunpack.c.l.b16 %v281
        %v324 = vunpack.c.h.b16 %v281
        %v325 = vunpack.c.l.b16 %v282
        %v326 = vunpack.c.l.b16 %v283
        %v327 = vunpack.c.h.b16 %v283
        %v328 = vunpack.c.l.b16 %v284
        %v329 = vunpack.c.l.b16 %v285
        %v330 = vunpack.c.h.b16 %v285
        %v331 = vunpack.c.l.b16 %v286
        %v332 = vpack.c.b16 %v311, %v308
        %v333 = vpack.c.b16 %v312, %v309
        %v334 = vpack.c.b16 %v313, %v310
        %v335 = vpack.c.b16 %v317, %v314
        %v336 = vpack.c.b16 %v318, %v315
        %v337 = vpack.c.b16 %v319, %v316
        %v338 = vpack.c.b16 %v323, %v320
        %v339 = vpack.c.b16 %v324, %v321
        %v340 = vpack.c.b16 %v325, %v322
        %v341 = vpack.c.b16 %v329, %v326
        %v342 = vpack.c.b16 %v330, %v327
        %v343 = vpack.c.b16 %v331, %v328
        %vm356 = vcmask 523264
        %v358 = vsel %vm356, %v291, 0
        %360 = vmatpush.bf16.msra.mxu0 0
        %361 = vmatpush.bf16.msra.mxu0 0
        %362 = vmatpush.bf16.msra.mxu0 0
        %363 = vmatpush.bf16.msra.mxu0 0
        %364 = vmatpush.bf16.msra.mxu0 %v341
        %365 = vmatpush.bf16.msra.mxu0 %v338
        %366 = vmatpush.bf16.msra.mxu0 %v335
        %367 = vmatpush.bf16.msra.mxu0 %v332
        %368 = vmatmul.bf16.gmra.mxu0 %v358
        %v369 = vpop.f32.mrf.mxu0
        %v370 = vadd.f32 0.0, %v369
        %v371 = vpop.f32.mrf.mxu0
        %v372 = vadd.f32 0.0, %v371
        %373 = vdwg.mxu0
        %374 = vmatpush.bf16.msra.mxu0 0
        %375 = vmatpush.bf16.msra.mxu0 0
        %376 = vmatpush.bf16.msra.mxu0 0
        %377 = vmatpush.bf16.msra.mxu0 0
        %378 = vmatpush.bf16.msra.mxu0 %v342
        %379 = vmatpush.bf16.msra.mxu0 %v339
        %380 = vmatpush.bf16.msra.mxu0 %v336
        %381 = vmatpush.bf16.msra.mxu0 %v333
        %382 = vmatmul.bf16.gmra.mxu0 %v358
        %v383 = vpop.f32.mrf.mxu0
        %v384 = vadd.f32 0.0, %v383
        %v385 = vpop.f32.mrf.mxu0
        %v386 = vadd.f32 0.0, %v385
        %387 = vdwg.mxu0
        %388 = vmatpush.bf16.msra.mxu0 0
        %389 = vmatpush.bf16.msra.mxu0 0
        %390 = vmatpush.bf16.msra.mxu0 0
        %391 = vmatpush.bf16.msra.mxu0 0
        %392 = vmatpush.bf16.msra.mxu0 %v343
        %393 = vmatpush.bf16.msra.mxu0 %v340
        %394 = vmatpush.bf16.msra.mxu0 %v337
        %395 = vmatpush.bf16.msra.mxu0 %v334
        %396 = vmatmul.bf16.gmra.mxu0 %v358
        %v397 = vpop.f32.mrf.mxu0
        %v398 = vadd.f32 0.0, %v397
        %v399 = vpop.f32.mrf.mxu0
        %v400 = vadd.f32 0.0, %v399
        %401 = vdwg.mxu0
        %v402 = vadd.f32 %v370, %v384
        %v403 = vadd.f32 %v372, %v386
        %v404 = vld [vmem:[#allocation8] sm:$0x1]
        %v405 = vperm.slane %v404, 0
        %v406 = vadd.f32 %v402, %v405
        %v407 = vadd.f32 %v403, %v405
        %v408 = vmax.f32 %v406, 0.0
        %v409 = vmax.f32 %v407, 0.0
        %v410 = vpack.c.bf16 %v409, %v408
        %v411 = vld [vmem:[#allocation7] sm:$0xf]
        %v412 = vld [vmem:[#allocation7 + $0x4] sm:$0xf]
        %v413 = vld [vmem:[#allocation7 + $0x8] sm:$0xf]
        %v414 = vld [vmem:[#allocation7 + $0xc] sm:$0xf]
        %v415 = vld [vmem:[#allocation7 + $0x10] sm:$0xf]
        %v416 = vld [vmem:[#allocation7 + $0x14] sm:$0xf]
        %v417 = vld [vmem:[#allocation7 + $0x18] sm:$0xf]
        %v418 = vld [vmem:[#allocation7 + $0x1c] sm:$0xf]
        %v419 = vld [vmem:[#allocation7 + $0x20] sm:$0xf]
        %v420 = vld [vmem:[#allocation7 + $0x24] sm:$0xf]
        %v421 = vld [vmem:[#allocation7 + $0x28] sm:$0xf]
        %v422 = vld [vmem:[#allocation7 + $0x2c] sm:$0xf]
        %v423 = vld [vmem:[#allocation7 + $0x30] sm:$0xf]
        %v424 = vld [vmem:[#allocation7 + $0x34] sm:$0xf]
        %v425 = vld [vmem:[#allocation7 + $0x38] sm:$0xf]
        %v426 = vld [vmem:[#allocation7 + $0x3c] sm:$0xf]
        %v427 = vld [vmem:[#allocation8 + $0x2] sm:$0x1]
        %v428 = vperm.slane %v427, 0
        %v445 = vunpack.c.l.b16 %v411
        %v446 = vunpack.c.l.b16 %v412
        %v447 = vunpack.c.l.b16 %v413
        %v448 = vunpack.c.l.b16 %v414
        %v449 = vunpack.c.l.b16 %v415
        %v450 = vunpack.c.l.b16 %v416
        %v451 = vunpack.c.l.b16 %v417
        %v452 = vunpack.c.l.b16 %v418
        %v453 = vunpack.c.l.b16 %v419
        %v454 = vunpack.c.l.b16 %v420
        %v455 = vunpack.c.l.b16 %v421
        %v456 = vunpack.c.l.b16 %v422
        %v457 = vunpack.c.l.b16 %v423
        %v458 = vunpack.c.l.b16 %v424
        %v459 = vunpack.c.l.b16 %v425
        %v460 = vunpack.c.l.b16 %v426
        %v461 = vpack.c.b16 %v446, %v445
        %v462 = vpack.c.b16 %v448, %v447
        %v463 = vpack.c.b16 %v450, %v449
        %v464 = vpack.c.b16 %v452, %v451
        %v465 = vpack.c.b16 %v454, %v453
        %v466 = vpack.c.b16 %v456, %v455
        %v467 = vpack.c.b16 %v458, %v457
        %v468 = vpack.c.b16 %v460, %v459
        %477 = vmatpush.bf16.msra.mxu0 %v468
        %478 = vmatpush.bf16.msra.mxu0 %v467
        %479 = vmatpush.bf16.msra.mxu0 %v466
        %480 = vmatpush.bf16.msra.mxu0 %v465
        %481 = vmatpush.bf16.msra.mxu0 %v464
        %482 = vmatpush.bf16.msra.mxu0 %v463
        %483 = vmatpush.bf16.msra.mxu0 %v462
        %484 = vmatpush.bf16.msra.mxu0 %v461
        %485 = vmatmul.bf16.gmra.mxu0 %v410
        %v486 = vpop.f32.mrf.mxu0
        %v487 = vadd.f32 %v428, %v486
        %v488 = vpop.f32.mrf.mxu0
        %v489 = vadd.f32 %v428, %v488
        %490 = vdwg.mxu0
        %v491 = vmax.f32 %v487, 0.0
        %v492 = vmax.f32 %v489, 0.0
        %v493 = vld [vmem:[#allocation8 + $0x3] sm:$0x1]
        %v494 = vperm.slane %v493, 0
        %v495 = vmul.f32 %v491, %v494
        %v496 = vmul.f32 %v492, %v494
        %v497 = vld [vmem:[#allocation8 + $0x4] sm:$0x1]
        %v498 = vperm.slane %v497, 0
        %v499 = vadd.f32 %v495, %v498
        %v500 = vadd.f32 %v496, %v498
        %v501 = vld [vmem:[#allocation8 + $0x1] sm:$0x1]
        %v502 = vperm.slane %v501, 0
        %v503 = vadd.f32 %v398, %v502
        %v504 = vadd.f32 %v400, %v502
        %v505 = vadd.f32 %v499, %v503
        %v506 = vadd.f32 %v500, %v504
        %v507 = vmax.f32 %v505, 0.0
        %v508 = vmax.f32 %v506, 0.0
        %509 = vst [vmem:[%s265] sm:$0xff] %v507
        %510 = vst [vmem:[%s265 + $0x8] sm:$0xff] %v508
        %s511 = sand.u32 %s120, 1
        %s512 = scalar_lea.sflag [#allocation4], %s511
        %s513 = sand.u32 %s120, 1
        %s514 = smul.addr %s513, 16
        %s515 = scalar_lea.vmem [#allocation10], %s514
        // Predicated region
        $region53: #{tpu_custom_call.1} parent=35 // pred_check
          %p516 = pneg %p130
        $region54: #{tpu_custom_call.1} parent=35 // pred_check_branch
          %518 = sbr.rel (%p516) target = $region56
        $region55: #{tpu_custom_call.1} parent=35 // pred_region
          %s519 = smul.u32 2, %s23
          %521 = vsyncadd %s512, 0
          %s522 = smul.addr %s519, 8
          %s523 = scalar_lea.hbm %s4, %s522
          %s524 = sshll.u32 %s515, 4
          %s525 = int_to_ptr.vmem [resolvable:$true] %s524
          %s526 = sshll.u32 %s523, 4
          %s527 = int_to_ptr.hbm [resolvable:$true] %s526
          %532 = dma.vmem_to_hbm [thread:$0]  %s525, 256, %s527, %s512, 128, 128, 8
        $region56: #{tpu_custom_call.1} parent=35 // pred_fallthru
          _
      $region36: #{tpu_custom_call.1} parent=5 // pred_fallthru
        _
      %p533 = scmp.le.s32.totalorder 2, %s18
      // Predicated region
      $region57: #{tpu_custom_call.1} parent=5 // pred_check
        %p534 = pneg %p533
      $region58: #{tpu_custom_call.1} parent=5 // pred_check_branch
        %536 = sbr.rel (%p534) target = $region60
      $region59: #{tpu_custom_call.1} parent=5 // pred_region
        %s537 = ssub.s32 %s18, 2
        // Predicated region
        $region61: #{tpu_custom_call.1} parent=59 // pred_check
          %p538 = pneg %p136
        $region62: #{tpu_custom_call.1} parent=59 // pred_check_branch
          %540 = sbr.rel (%p538) target = $region64
        $region63: #{tpu_custom_call.1} parent=59 // pred_region
          %s541 = sand.u32 %s121, 1
          %s542 = scalar_lea.sflag [#allocation4], %s541
          %s543 = sand.u32 %s121, 1
          %s544 = smul.addr %s543, 16
          %s545 = scalar_lea.vmem [#allocation10], %s544
          %547 = dma.done %s542, 256
        $region64: #{tpu_custom_call.1} parent=59 // pred_fallthru
          _
      $region60: #{tpu_custom_call.1} parent=5 // pred_fallthru
        _
    $region6: #{tpu_custom_call.1} parent=1 // loop_footer
      %s22 = sadd.s32 1, %s18
    $region7: #{tpu_custom_call.1} parent=1 // loop_footer_branch
      %17 = sbr.rel target = $region3
    $region8: #{tpu_custom_call.1} parent=1 // loop_exit
      _
    %548 = vsyncpa [#allocation3], 1
    %s549 = scalar_lea.sflag [#allocation3], 1
    %550 = vsyncpa %s549, 1
    %551 = vsyncpa [#allocation6], 1
    %552 = vsyncpa [#allocation9], 1
    %553 = vsyncpa [#allocation4], 1
    %s554 = scalar_lea.sflag [#allocation4], 1
    %555 = vsyncpa %s554, 1

</llo_original>
